<compile_context>
chip_gen: v6e
topology: v6e:2x2x1
jax: 0.10.0
libtpu: 0.0.40
codegen_flags: <defaults>
</compile_context>

<pallas_src>
import jax
import jax.numpy as jnp
from jax.experimental import pallas as pl
from jax.experimental.pallas import tpu as pltpu


def _round_up(x, m):
    return ((x + m - 1) // m) * m


_VMEM_LIMIT = 48 * 1024 * 1024  # > v5e 16 MiB default, < v7x 64 MiB physical


# ----------------------------------------------------------------------------
# Fused kernel: per-tile in-VMEM row gather + K per-offset matmuls + shift + ReLU
# ----------------------------------------------------------------------------
def deconv_bn_relu_fused(idx, feats, w3, shift, *, tn, out_dtype):
    """idx: [K, Np] int32 (sentinel -> zero row), feats: [Nf, inc] f32 (VMEM-resident),
    w3: [K, inc, outc_p] bf16 (BN scale folded), shift: [1, outc_p] f32."""
    K, Np = idx.shape
    Nf, inc = feats.shape
    outc_p = w3.shape[-1]

    def kernel(idx_ref, feats_ref, w_ref, shift_ref, o_ref):
        f = feats_ref[...]                                   # (Nf, inc) f32, resident
        acc = jnp.zeros((tn, outc_p), jnp.float32)
        for k in range(K):                                   # static unroll over offsets
            # Row gather straight out of VMEM (indices are a lane vector).
            g = jnp.take(f, idx_ref[k, :], axis=0, mode="clip")   # (tn, inc)
            acc = acc + jnp.dot(g.astype(jnp.bfloat16), w_ref[k],
                                preferred_element_type=jnp.float32)
        acc = acc + shift_ref[...]
        o_ref[...] = jnp.maximum(acc, 0.0).astype(o_ref.dtype)

    return pl.pallas_call(
        kernel,
        out_shape=jax.ShapeDtypeStruct((Np, outc_p), out_dtype),
        grid_spec=pltpu.PrefetchScalarGridSpec(
            num_scalar_prefetch=0,
            grid=(Np // tn,),
            in_specs=[
                pl.BlockSpec((K, tn), lambda i: (0, i)),          # per-tile gather indices
                pl.BlockSpec((Nf, inc), lambda i: (0, 0)),        # feats resident (DMA'd once)
                pl.BlockSpec((K, inc, outc_p), lambda i: (0, 0, 0)),  # folded weight resident
                pl.BlockSpec((1, outc_p), lambda i: (0, 0)),      # BN shift resident
            ],
            out_specs=pl.BlockSpec((tn, outc_p), lambda i: (i, 0)),   # lane-dense output
        ),
        compiler_params=pltpu.CompilerParams(
            dimension_semantics=("parallel",),
            vmem_limit_bytes=_VMEM_LIMIT,
        ),
    )(idx, feats, w3, shift)


# ----------------------------------------------------------------------------
# Fallback kernel (pre-gathered slab) — only used if in-kernel gather fails to lower.
# ----------------------------------------------------------------------------
def deconv_bn_relu_pregathered(g2, w2d, shift, *, tn, out_dtype):
    Np, KC = g2.shape
    outc_p = w2d.shape[-1]

    def kernel(g_ref, w_ref, shift_ref, o_ref):
        y = jnp.dot(g_ref[...], w_ref[...], preferred_element_type=jnp.float32)
        y = y + shift_ref[...]
        o_ref[...] = jnp.maximum(y, 0.0).astype(o_ref.dtype)

    return pl.pallas_call(
        kernel,
        out_shape=jax.ShapeDtypeStruct((Np, outc_p), out_dtype),
        grid_spec=pltpu.PrefetchScalarGridSpec(
            num_scalar_prefetch=0,
            grid=(Np // tn,),
            in_specs=[
                pl.BlockSpec((tn, KC), lambda i: (i, 0)),
                pl.BlockSpec((KC, outc_p), lambda i: (0, 0)),
                pl.BlockSpec((1, outc_p), lambda i: (0, 0)),
            ],
            out_specs=pl.BlockSpec((tn, outc_p), lambda i: (i, 0)),
        ),
        compiler_params=pltpu.CompilerParams(
            dimension_semantics=("parallel",),
            vmem_limit_bytes=_VMEM_LIMIT,
        ),
    )(g2, w2d, shift)


# ----------------------------------------------------------------------------
# Glue: transposed-conv kernel map (neighbor lookup) in plain JAX.
# Sort + searchsorted on linearized coords: O(K*N log N), no [K, N, N] tensor.
# Assumes unique voxel coords (standard for sparse tensors).
# ----------------------------------------------------------------------------
def build_kernel_offsets(ks):
    r = ks // 2
    offs = []
    for dz in range(-r, r + 1):
        for dy in range(-r, r + 1):
            for dx in range(-r, r + 1):
                offs.append((dx, dy, dz))
    return jnp.asarray(offs, dtype=jnp.int32)  # [K, 3]


def build_gather_indices(coords, offsets):
    """idx[k, i] = j such that coords[j] == coords[i] - offsets[k], else N (missing)."""
    N = coords.shape[0]
    query = coords[None, :, :] - offsets[:, None, :]          # [K, N, 3]
    lo = jnp.minimum(coords.min(axis=0), query.reshape(-1, 3).min(axis=0))
    hi = jnp.maximum(coords.max(axis=0), query.reshape(-1, 3).max(axis=0))
    extent = hi - lo + 1                                       # injective over coords & queries

    def lin(c):
        c = c - lo
        return (c[..., 0] * extent[1] + c[..., 1]) * extent[2] + c[..., 2]

    keys = lin(coords)                                         # [N]
    qkeys = lin(query)                                         # [K, N]
    order = jnp.argsort(keys)
    skeys = keys[order]
    pos = jnp.clip(jnp.searchsorted(skeys, qkeys), 0, N - 1)   # [K, N]
    found = skeys[pos] == qkeys
    return jnp.where(found, order[pos], N)                     # N = sentinel -> zero row


# ----------------------------------------------------------------------------
# BasicDeconvolutionBlock equivalent.
# ----------------------------------------------------------------------------
class BasicDeconvolutionBlockPallas:
    def __init__(self, inc, outc, ks=3, stride=1, key=None, tile_n=1024,
                 out_dtype=jnp.bfloat16):
        assert stride == 1, "stride=1 (default) supported in this synthetic kernel"
        self.inc, self.outc, self.ks = inc, outc, ks
        self.tile_n = int(tile_n)
        self.out_dtype = out_dtype
        K = ks ** 3
        key = jax.random.PRNGKey(0) if key is None else key
        k_w, k_g, k_b, k_m, k_v = jax.random.split(key, 5)

        # torchsparse Conv3d weight: [K, inc, outc]
        # TODO(synk): kernel-offset ordering / transposed-conv offset sign not
        #             validated against a real torchsparse reference.
        weight = (jax.random.normal(k_w, (K, inc, outc), jnp.float32)
                  * (1.0 / jnp.sqrt(inc * K)))

        # Eval-mode BatchNorm (running stats) folded into scale/shift.
        # TODO(synk): train-mode BatchNorm (batch statistics) not implemented.
        gamma = 1.0 + 0.1 * jax.random.normal(k_g, (outc,), jnp.float32)
        beta = 0.1 * jax.random.normal(k_b, (outc,), jnp.float32)
        running_mean = 0.1 * jax.random.normal(k_m, (outc,), jnp.float32)
        running_var = jnp.abs(1.0 + 0.1 * jax.random.normal(k_v, (outc,), jnp.float32))
        eps = 1e-5
        scale = gamma / jnp.sqrt(running_var + eps)
        shift = beta - running_mean * scale

        # Fold BN scale into the weight; pad outc to a lane-dense multiple of 128
        # (zero columns, sliced off after the kernel) so the epilogue + stores are
        # unmasked full-lane ops.
        self.outc_p = _round_up(outc, 128)
        w_folded = weight * scale[None, None, :]
        w3 = jnp.zeros((K, inc, self.outc_p), jnp.float32).at[..., :outc].set(w_folded)
        self.w3 = w3.astype(jnp.bfloat16)                       # [K, inc, outc_p]
        self.w2d = self.w3.reshape(K * inc, self.outc_p)        # fallback-path weight
        self.shift_p = jnp.zeros((1, self.outc_p), jnp.float32).at[:, :outc].set(shift[None, :])
        self.offsets = build_kernel_offsets(ks)
        self._use_fused = None                                   # decided on first call

    def __call__(self, feats, coords):
        N = feats.shape[0]
        K = self.ks ** 3

        # N tiling: multiple of 128 (lane-dense idx tiles, clean sublane layout);
        # default 1024 per HBM-roofline sweep.  Whenever N > tn the grid has >= 2
        # "parallel" steps -> both v7x TensorCores are used.
        tn = max(128, min(_round_up(self.tile_n, 128), _round_up(N, 128)))
        Np = _round_up(N, tn)

        # Kernel map + padding done UPSTREAM of any K-amplified tensor.
        idx = build_gather_indices(coords, self.offsets)                   # [K, N]
        idx = jnp.pad(idx, ((0, 0), (0, Np - N)), constant_values=N)       # [K, Np]

        # Gather source: feats + zero sentinel row, rows padded for clean tiling.
        # TODO(synk): for N*inc beyond VMEM, replace the resident feats block with
        #             per-tile manual make_async_copy row gathers (scalar-prefetch idx).
        nf = max(_round_up(N + 1, 8), tn)
        feats_pad = jnp.zeros((nf, self.inc), jnp.float32).at[:N].set(
            feats.astype(jnp.float32))

        if self._use_fused is not False:
            try:
                out = deconv_bn_relu_fused(idx, feats_pad, self.w3, self.shift_p,
                                           tn=tn, out_dtype=self.out_dtype)
                out = jax.block_until_ready(out)
                self._use_fused = True
            except Exception:
                self._use_fused = False
        if self._use_fused is False:
            # Fallback: pre-gathered [Np, K*inc] slab (same math, K folded into the
            # contraction).  Only for builds lacking in-kernel gather lowering.
            g = feats_pad.astype(jnp.bfloat16)[idx]                        # [K, Np, inc]
            g2 = jnp.transpose(g, (1, 0, 2)).reshape(Np, K * self.inc)
            out = deconv_bn_relu_pregathered(g2, self.w2d, self.shift_p,
                                             tn=tn, out_dtype=self.out_dtype)
        return out[:N, :self.outc]


def reference_forward(block, feats, coords):
    """Pure-JAX reference with matching precision (bf16 matmul inputs, f32 accum)."""
    N = feats.shape[0]
    K = block.ks ** 3
    idx = build_gather_indices(coords, block.offsets)                      # [K, N]
    feats_pad = jnp.concatenate(
        [feats.astype(jnp.float32), jnp.zeros((1, block.inc), jnp.float32)], axis=0)
    acc = jnp.zeros((N, block.outc_p), jnp.float32)
    for k in range(K):
        g = feats_pad[idx[k]]                                              # [N, inc]
        acc = acc + jnp.dot(g.astype(jnp.bfloat16), block.w3[k],
                            preferred_element_type=jnp.float32)
    out = jnp.maximum(acc + block.shift_p, 0.0)
    return out[:, :block.outc]


if __name__ == "__main__":
    # Small synthetic sparse tensor: all 64 voxels of a 4x4x4 grid (unique coords).
    inc, outc, ks = 4, 8, 3
    grid_side = 4
    xs, ys, zs = jnp.meshgrid(
        jnp.arange(grid_side), jnp.arange(grid_side), jnp.arange(grid_side),
        indexing="ij",
    )
    coords = jnp.stack(
        [xs.reshape(-1), ys.reshape(-1), zs.reshape(-1)], axis=-1
    ).astype(jnp.int32)                                        # [64, 3]
    N = coords.shape[0]

    key = jax.random.PRNGKey(0)
    k_feat, k_param = jax.random.split(key)
    feats = jax.random.normal(k_feat, (N, inc), jnp.float32)   # [64, 4]

    block = BasicDeconvolutionBlockPallas(inc, outc, ks=ks, stride=1, key=k_param)

    out = jax.block_until_ready(block(feats, coords))
    ref = reference_forward(block, feats, coords)

    assert out.shape == (N, outc)
    # bf16 output rounding dominates the error budget.
    assert jnp.allclose(out.astype(jnp.float32), ref, atol=2e-2, rtol=2e-2), \
        "mismatch vs JAX reference"

    print("KERNEL_OK")
</pallas_src>

<mosaic_0001>
module attributes {stable_mosaic.version = 11 : i64} {
  func.func @kernel(%arg0: i32, %arg1: memref<128x108xbf16, #tpu.memory_space<vmem>>, %arg2: memref<108x128xbf16, #tpu.memory_space<vmem>>, %arg3: memref<1x128xf32, #tpu.memory_space<vmem>>, %arg4: memref<128x128xbf16, #tpu.memory_space<vmem>>) attributes {dimension_semantics = [#tpu.dimension_semantics<parallel>], iteration_bounds = array<i64: 1>, scalar_prefetch = 0 : i64, scratch_operands = 0 : i64, tpu.core_type = #tpu.core_type<tc>, window_params = [{transform_indices = @transform_0, window_bounds = array<i64: 128, 108>}, {pipeline_mode = #tpu.pipeline_mode<synchronous>, transform_indices = @transform_1, window_bounds = array<i64: 108, 128>}, {pipeline_mode = #tpu.pipeline_mode<synchronous>, transform_indices = @transform_2, window_bounds = array<i64: 1, 128>}, {transform_indices = @transform_3, window_bounds = array<i64: 128, 128>}]} {
    %c0 = arith.constant 0 : index
    %c0_0 = arith.constant 0 : index
    %0 = vector.load %arg1[%c0, %c0_0] : memref<128x108xbf16, #tpu.memory_space<vmem>>, vector<128x108xbf16>
    %c0_1 = arith.constant 0 : index
    %c0_2 = arith.constant 0 : index
    %1 = vector.load %arg2[%c0_1, %c0_2] : memref<108x128xbf16, #tpu.memory_space<vmem>>, vector<108x128xbf16>
    %cst = arith.constant dense<0.000000e+00> : vector<128x128xf32>
    %2 = tpu.matmul %0, %1, %cst {dimension_numbers = #tpu.dot_dimension_numbers<[1], [0], [0], [1], [0, 0, 1, 1], [], []>} : vector<128x108xbf16>, vector<108x128xbf16>, vector<128x128xf32> -> vector<128x128xf32>
    %c0_3 = arith.constant 0 : index
    %c0_4 = arith.constant 0 : index
    %3 = vector.load %arg3[%c0_3, %c0_4] : memref<1x128xf32, #tpu.memory_space<vmem>>, vector<1x128xf32>
    %4 = vector.broadcast %3 : vector<1x128xf32> to vector<128x128xf32>
    %5 = arith.addf %2, %4 : vector<128x128xf32>
    %cst_5 = arith.constant 0.000000e+00 : f32
    %6 = vector.broadcast %cst_5 : f32 to vector<128x128xf32>
    %7 = arith.maximumf %5, %6 : vector<128x128xf32>
    %8 = arith.truncf %7 : vector<128x128xf32> to vector<128x128xbf16>
    %c0_6 = arith.constant 0 : index
    %c0_7 = arith.constant 0 : index
    %9 = vector.load %arg4[%c0_6, %c0_7] : memref<128x128xbf16, #tpu.memory_space<vmem>>, vector<128x128xbf16>
    tpu.vector_store %arg4[%c0_6, %c0_7], %8 {strides = array<i32>} : memref<128x128xbf16, #tpu.memory_space<vmem>>, vector<128x128xbf16>,
    return
  }
  func.func @transform_0(%arg0: i32) -> (i32, i32) {
    %c0_i32 = arith.constant 0 : i32
    %c0_i32_0 = arith.constant 0 : i32
    return %arg0, %c0_i32 : i32, i32
  }
  func.func @transform_1(%arg0: i32) -> (i32, i32) {
    %c0_i32 = arith.constant 0 : i32
    %c0_i32_0 = arith.constant 0 : i32
    %c0_i32_1 = arith.constant 0 : i32
    return %c0_i32, %c0_i32_0 : i32, i32
  }
  func.func @transform_2(%arg0: i32) -> (i32, i32) {
    %c0_i32 = arith.constant 0 : i32
    %c0_i32_0 = arith.constant 0 : i32
    %c0_i32_1 = arith.constant 0 : i32
    return %c0_i32, %c0_i32_0 : i32, i32
  }
  func.func @transform_3(%arg0: i32) -> (i32, i32) {
    %c0_i32 = arith.constant 0 : i32
    %c0_i32_0 = arith.constant 0 : i32
    return %arg0, %c0_i32 : i32, i32
  }
}

</mosaic_0001>

<llo_original>
// kernel: tpu_custom_call.1
$region0: #{tpu_custom_call.1}
  #allocation0 [shape = 'u32[]', space=smem, size = 0x4, offset = 0x4, fixed_abs, tag = 'smem constant byte address 0x4 - core index']
  #allocation1 [shape = 'u32[144,128]{1,0:T(1,128)}', space=vmem, size = 0x12000, scoped, tag = 'internal scratch']
  %s0 = inlined_call_operand.vmem [shape: bf16[128,108], index: 0, kind: input, shape index: {}]
  %s1 = inlined_call_operand.vmem [shape: bf16[108,128], index: 1, kind: input, shape index: {}]
  %s2 = inlined_call_operand.vmem [shape: f32[1,128], index: 2, kind: input, shape index: {}]
  %s3 = inlined_call_operand.hbm [shape: bf16[128,128], index: 3, kind: output, shape index: {}]
  %s4 = sld [smem:[#allocation0]]
  $region22: #{tpu_custom_call.1} parent=0
    _
  %s6 = ssub.s32 1, %s4
  %s7 = scalar_select 0, %s6, %s4
  $region1: #{tpu_custom_call.1} parent=0
    #allocation2 [shape = 'u8[32768]{0}', space=vmem, size = 0x8000, scoped, tag = 'output window, operand 0, single buffered']
    #allocation3 [shape = 's32[1]{0}', space=sflag, size = 0x4, scoped, tag = 'scoped memory for tpu_custom_call.1']
    %8 = vsyncpa [#allocation3], 0
    // Predicated region
    $region2: #{tpu_custom_call.1} parent=1 // pred_check
      _
    $region3: #{tpu_custom_call.1} parent=1 // pred_check_branch
      %10 = sbr.rel (0) target = $region5
    $region4: #{tpu_custom_call.1} parent=1 // pred_region
      _
    $region5: #{tpu_custom_call.1} parent=1 // pred_fallthru
      _
    // Predicated region
    $region6: #{tpu_custom_call.1} parent=1 // pred_check
      _
    $region7: #{tpu_custom_call.1} parent=1 // pred_check_branch
      %12 = sbr.rel (0) target = $region9
    $region8: #{tpu_custom_call.1} parent=1 // pred_region
      _
    $region9: #{tpu_custom_call.1} parent=1 // pred_fallthru
      _
    // Predicated region
    $region10: #{tpu_custom_call.1} parent=1 // pred_check
      _
    $region11: #{tpu_custom_call.1} parent=1 // pred_check_branch
      %14 = sbr.rel (0) target = $region13
    $region12: #{tpu_custom_call.1} parent=1 // pred_region
      _
    $region13: #{tpu_custom_call.1} parent=1 // pred_fallthru
      _
    %v16 = vld [vmem:[%s0] sm:$0xf]
    %v17 = vld [vmem:[%s0 + $0x4] sm:$0xf]
    %v18 = vld [vmem:[%s0 + $0x8] sm:$0xf]
    %v19 = vld [vmem:[%s0 + $0xc] sm:$0xf]
    %v20 = vld [vmem:[%s0 + $0x10] sm:$0xf]
    %v21 = vld [vmem:[%s0 + $0x14] sm:$0xf]
    %v22 = vld [vmem:[%s0 + $0x18] sm:$0xf]
    %v23 = vld [vmem:[%s0 + $0x1c] sm:$0xf]
    %v24 = vld [vmem:[%s0 + $0x20] sm:$0xf]
    %v25 = vld [vmem:[%s0 + $0x24] sm:$0xf]
    %v26 = vld [vmem:[%s0 + $0x28] sm:$0xf]
    %v27 = vld [vmem:[%s0 + $0x2c] sm:$0xf]
    %v28 = vld [vmem:[%s0 + $0x30] sm:$0xf]
    %v29 = vld [vmem:[%s0 + $0x34] sm:$0xf]
    %v30 = vld [vmem:[%s0 + $0x38] sm:$0xf]
    %v31 = vld [vmem:[%s0 + $0x3c] sm:$0xf]
    %v32 = vld [vmem:[%s1] sm:$0xf]
    %v33 = vld [vmem:[%s1 + $0x4] sm:$0xf]
    %v34 = vld [vmem:[%s1 + $0x8] sm:$0xf]
    %v35 = vld [vmem:[%s1 + $0xc] sm:$0xf]
    %v36 = vld [vmem:[%s1 + $0x10] sm:$0xf]
    %v37 = vld [vmem:[%s1 + $0x14] sm:$0xf]
    %v38 = vld [vmem:[%s1 + $0x18] sm:$0xf]
    %v39 = vld [vmem:[%s1 + $0x1c] sm:$0xf]
    %v40 = vld [vmem:[%s1 + $0x20] sm:$0xf]
    %v41 = vld [vmem:[%s1 + $0x24] sm:$0xf]
    %v42 = vld [vmem:[%s1 + $0x28] sm:$0xf]
    %v43 = vld [vmem:[%s1 + $0x2c] sm:$0xf]
    %v44 = vld [vmem:[%s1 + $0x30] sm:$0xf]
    %v45 = vld [vmem:[%s1 + $0x34] sm:$0x3]
    %v46 = vld [vmem:[%s2] sm:$0x1]
    %v48 = vlaneseq
    %v49 = vshrl.u32 %v48, 7
    %v50 = vsub.s32 0, %v49
    %v51 = vrot.slane %v46, %v50
    %v69 = vunpack.c.l.b16 %v16
    %v70 = vunpack.c.l.b16 %v17
    %v71 = vunpack.c.l.b16 %v18
    %v72 = vunpack.c.l.b16 %v19
    %v73 = vunpack.c.l.b16 %v20
    %v74 = vunpack.c.l.b16 %v21
    %v75 = vunpack.c.l.b16 %v22
    %v76 = vunpack.c.l.b16 %v23
    %v77 = vunpack.c.l.b16 %v24
    %v78 = vunpack.c.l.b16 %v25
    %v79 = vunpack.c.l.b16 %v26
    %v80 = vunpack.c.l.b16 %v27
    %v81 = vunpack.c.l.b16 %v28
    %v82 = vunpack.c.l.b16 %v29
    %v83 = vunpack.c.l.b16 %v30
    %v84 = vunpack.c.l.b16 %v31
    %v85 = vpack.c.b16 %v70, %v69
    %v86 = vpack.c.b16 %v72, %v71
    %v87 = vpack.c.b16 %v74, %v73
    %v88 = vpack.c.b16 %v76, %v75
    %v89 = vpack.c.b16 %v78, %v77
    %v90 = vpack.c.b16 %v80, %v79
    %v91 = vpack.c.b16 %v82, %v81
    %v92 = vpack.c.b16 %v84, %v83
    %v107 = vunpack.c.l.b16 %v32
    %v108 = vunpack.c.l.b16 %v33
    %v109 = vunpack.c.l.b16 %v34
    %v110 = vunpack.c.l.b16 %v35
    %v111 = vunpack.c.l.b16 %v36
    %v112 = vunpack.c.l.b16 %v37
    %v113 = vunpack.c.l.b16 %v38
    %v114 = vunpack.c.l.b16 %v39
    %v115 = vunpack.c.l.b16 %v40
    %v116 = vunpack.c.l.b16 %v41
    %v117 = vunpack.c.l.b16 %v42
    %v118 = vunpack.c.l.b16 %v43
    %v119 = vunpack.c.l.b16 %v44
    %v120 = vunpack.c.l.b16 %v45
    %v121 = vpack.c.b16 %v108, %v107
    %v122 = vpack.c.b16 %v110, %v109
    %v123 = vpack.c.b16 %v112, %v111
    %v124 = vpack.c.b16 %v114, %v113
    %v125 = vpack.c.b16 %v116, %v115
    %v126 = vpack.c.b16 %v118, %v117
    %v127 = vpack.c.b16 %v120, %v119
    %vm134 = vcmask 883712
    %v136 = vsel %vm134, %v85, 0
    %v139 = vsel %vm134, %v86, 0
    %v142 = vsel %vm134, %v87, 0
    %v145 = vsel %vm134, %v88, 0
    %v148 = vsel %vm134, %v89, 0
    %v151 = vsel %vm134, %v90, 0
    %v154 = vsel %vm134, %v91, 0
    %v157 = vsel %vm134, %v92, 0
    %vm159 = vcmask 1045504
    %v161 = vsel %vm159, %v127, 0
    %163 = vmatprep.subr.bf16.mxu0 0
    %164 = vmatpush1.bf16.msra.mxu0 0
    %165 = vmatprep.subr.bf16.mxu0 0
    %166 = vmatpush1.bf16.msra.mxu0 %v161
    %167 = vmatprep.subr.bf16.mxu0 0
    %168 = vmatpush1.bf16.msra.mxu0 %v126
    %169 = vmatprep.subr.bf16.mxu0 0
    %170 = vmatpush1.bf16.msra.mxu0 %v125
    %171 = vmatprep.subr.bf16.mxu0 0
    %172 = vmatpush1.bf16.msra.mxu0 %v124
    %173 = vmatprep.subr.bf16.mxu0 0
    %174 = vmatpush1.bf16.msra.mxu0 %v123
    %175 = vmatprep.subr.bf16.mxu0 0
    %176 = vmatpush1.bf16.msra.mxu0 %v122
    %177 = vmatprep.subr.bf16.mxu0 0
    %178 = vmatpush1.bf16.msra.mxu0 %v121
    %179 = vmatprep.subr.bf16.mxu0 0
    %180 = vmatpush2.bf16.msra.mxu0 0
    %181 = vmatprep.subr.bf16.mxu0 0
    %182 = vmatpush2.bf16.msra.mxu0 0
    %183 = vmatprep.subr.bf16.mxu0 0
    %184 = vmatpush2.bf16.msra.mxu0 0
    %185 = vmatprep.subr.bf16.mxu0 0
    %186 = vmatpush2.bf16.msra.mxu0 0
    %187 = vmatprep.subr.bf16.mxu0 0
    %188 = vmatpush2.bf16.msra.mxu0 0
    %189 = vmatprep.subr.bf16.mxu0 0
    %190 = vmatpush2.bf16.msra.mxu0 0
    %191 = vmatprep.subr.bf16.mxu0 0
    %192 = vmatpush2.bf16.msra.mxu0 0
    %193 = vmatprep.subr.bf16.mxu0 0
    %194 = vmatpush2.bf16.msra.mxu0 0
    %195 = vmatprep.mubr.bf16.mxu0 0
    %196 = vmatmul.mubr.bf16.gmra.mxu0 %v136
    %v197 = vpop.f32.mrf.mxu0
    %v198 = vadd.f32 %v51, %v197
    %v199 = vpop.f32.mrf.mxu0
    %v200 = vpop.f32.mrf.mxu0
    %v201 = vadd.f32 %v51, %v200
    %v202 = vpop.f32.mrf.mxu0
    %203 = vmatprep.mubr.bf16.mxu0 0
    %204 = vmatmul.mubr.bf16.gmra.mxu0 %v139
    %v205 = vpop.f32.mrf.mxu0
    %v206 = vadd.f32 %v51, %v205
    %v207 = vpop.f32.mrf.mxu0
    %v208 = vpop.f32.mrf.mxu0
    %v209 = vadd.f32 %v51, %v208
    %v210 = vpop.f32.mrf.mxu0
    %211 = vmatprep.mubr.bf16.mxu0 0
    %212 = vmatmul.mubr.bf16.gmra.mxu0 %v142
    %v213 = vpop.f32.mrf.mxu0
    %v214 = vadd.f32 %v51, %v213
    %v215 = vpop.f32.mrf.mxu0
    %v216 = vpop.f32.mrf.mxu0
    %v217 = vadd.f32 %v51, %v216
    %v218 = vpop.f32.mrf.mxu0
    %219 = vmatprep.mubr.bf16.mxu0 0
    %220 = vmatmul.mubr.bf16.gmra.mxu0 %v145
    %v221 = vpop.f32.mrf.mxu0
    %v222 = vadd.f32 %v51, %v221
    %v223 = vpop.f32.mrf.mxu0
    %v224 = vpop.f32.mrf.mxu0
    %v225 = vadd.f32 %v51, %v224
    %v226 = vpop.f32.mrf.mxu0
    %227 = vmatprep.mubr.bf16.mxu0 0
    %228 = vmatmul.mubr.bf16.gmra.mxu0 %v148
    %v229 = vpop.f32.mrf.mxu0
    %v230 = vadd.f32 %v51, %v229
    %v231 = vpop.f32.mrf.mxu0
    %v232 = vpop.f32.mrf.mxu0
    %v233 = vadd.f32 %v51, %v232
    %v234 = vpop.f32.mrf.mxu0
    %235 = vmatprep.mubr.bf16.mxu0 0
    %236 = vmatmul.mubr.bf16.gmra.mxu0 %v151
    %v237 = vpop.f32.mrf.mxu0
    %v238 = vadd.f32 %v51, %v237
    %v239 = vpop.f32.mrf.mxu0
    %v240 = vpop.f32.mrf.mxu0
    %v241 = vadd.f32 %v51, %v240
    %v242 = vpop.f32.mrf.mxu0
    %243 = vmatprep.mubr.bf16.mxu0 0
    %244 = vmatmul.mubr.bf16.gmra.mxu0 %v154
    %v245 = vpop.f32.mrf.mxu0
    %v246 = vadd.f32 %v51, %v245
    %v247 = vpop.f32.mrf.mxu0
    %v248 = vpop.f32.mrf.mxu0
    %v249 = vadd.f32 %v51, %v248
    %v250 = vpop.f32.mrf.mxu0
    %251 = vmatprep.mubr.bf16.mxu0 0
    %252 = vmatmul.mubr.bf16.gmra.mxu0 %v157
    %v253 = vpop.f32.mrf.mxu0
    %v254 = vadd.f32 %v51, %v253
    %v255 = vpop.f32.mrf.mxu0
    %v256 = vpop.f32.mrf.mxu0
    %v257 = vadd.f32 %v51, %v256
    %v258 = vpop.f32.mrf.mxu0
    %259 = vdwg.mxu0
    %v260 = vmax.f32 %v198, 0.0
    %v261 = vmax.f32 %v201, 0.0
    %v262 = vmax.f32 %v206, 0.0
    %v263 = vmax.f32 %v209, 0.0
    %v264 = vmax.f32 %v214, 0.0
    %v265 = vmax.f32 %v217, 0.0
    %v266 = vmax.f32 %v222, 0.0
    %v267 = vmax.f32 %v225, 0.0
    %v268 = vmax.f32 %v230, 0.0
    %v269 = vmax.f32 %v233, 0.0
    %v270 = vmax.f32 %v238, 0.0
    %v271 = vmax.f32 %v241, 0.0
    %v272 = vmax.f32 %v246, 0.0
    %v273 = vmax.f32 %v249, 0.0
    %v274 = vmax.f32 %v254, 0.0
    %v275 = vmax.f32 %v257, 0.0
    %v276 = vpack.c.bf16 %v261, %v260
    %v277 = vpack.c.bf16 %v263, %v262
    %v278 = vpack.c.bf16 %v265, %v264
    %v279 = vpack.c.bf16 %v267, %v266
    %v280 = vpack.c.bf16 %v269, %v268
    %v281 = vpack.c.bf16 %v271, %v270
    %v282 = vpack.c.bf16 %v273, %v272
    %v283 = vpack.c.bf16 %v275, %v274
    %v292 = vunpack.c.l.b16 %v276
    %v293 = vunpack.c.h.b16 %v276
    %v294 = vunpack.c.l.b16 %v277
    %v295 = vunpack.c.h.b16 %v277
    %v296 = vunpack.c.l.b16 %v278
    %v297 = vunpack.c.h.b16 %v278
    %v298 = vunpack.c.l.b16 %v279
    %v299 = vunpack.c.h.b16 %v279
    %v300 = vunpack.c.l.b16 %v280
    %v301 = vunpack.c.h.b16 %v280
    %v302 = vunpack.c.l.b16 %v281
    %v303 = vunpack.c.h.b16 %v281
    %v304 = vunpack.c.l.b16 %v282
    %v305 = vunpack.c.h.b16 %v282
    %v306 = vunpack.c.l.b16 %v283
    %v307 = vunpack.c.h.b16 %v283
    %v308 = vpack.c.b16 %v292, %v292
    %v309 = vpack.c.b16 %v293, %v293
    %v310 = vpack.c.b16 %v294, %v294
    %v311 = vpack.c.b16 %v295, %v295
    %v312 = vpack.c.b16 %v296, %v296
    %v313 = vpack.c.b16 %v297, %v297
    %v314 = vpack.c.b16 %v298, %v298
    %v315 = vpack.c.b16 %v299, %v299
    %v316 = vpack.c.b16 %v300, %v300
    %v317 = vpack.c.b16 %v301, %v301
    %v318 = vpack.c.b16 %v302, %v302
    %v319 = vpack.c.b16 %v303, %v303
    %v320 = vpack.c.b16 %v304, %v304
    %v321 = vpack.c.b16 %v305, %v305
    %v322 = vpack.c.b16 %v306, %v306
    %v323 = vpack.c.b16 %v307, %v307
    %340 = vst [vmem:[#allocation2] sm:$0xf] %v308
    %341 = vst [vmem:[#allocation2 + $0x4] sm:$0xf] %v309
    %342 = vst [vmem:[#allocation2 + $0x8] sm:$0xf] %v310
    %343 = vst [vmem:[#allocation2 + $0xc] sm:$0xf] %v311
    %344 = vst [vmem:[#allocation2 + $0x10] sm:$0xf] %v312
    %345 = vst [vmem:[#allocation2 + $0x14] sm:$0xf] %v313
    %346 = vst [vmem:[#allocation2 + $0x18] sm:$0xf] %v314
    %347 = vst [vmem:[#allocation2 + $0x1c] sm:$0xf] %v315
    %348 = vst [vmem:[#allocation2 + $0x20] sm:$0xf] %v316
    %349 = vst [vmem:[#allocation2 + $0x24] sm:$0xf] %v317
    %350 = vst [vmem:[#allocation2 + $0x28] sm:$0xf] %v318
    %351 = vst [vmem:[#allocation2 + $0x2c] sm:$0xf] %v319
    %352 = vst [vmem:[#allocation2 + $0x30] sm:$0xf] %v320
    %353 = vst [vmem:[#allocation2 + $0x34] sm:$0xf] %v321
    %354 = vst [vmem:[#allocation2 + $0x38] sm:$0xf] %v322
    %355 = vst [vmem:[#allocation2 + $0x3c] sm:$0xf] %v323
    // Predicated region
    $region14: #{tpu_custom_call.1} parent=1 // pred_check
      _
    $region15: #{tpu_custom_call.1} parent=1 // pred_check_branch
      %357 = sbr.rel (0) target = $region17
    $region16: #{tpu_custom_call.1} parent=1 // pred_region
      %s359 = ssub.s32 1024, 1024
      %360 = vsyncadd [#allocation3], %s359
      %s361 = sshll.u32 [#allocation2], 4
      %s362 = int_to_ptr.vmem [resolvable:$true] %s361
      %367 = dma.vmem_to_hbm [thread:$0]  %s362, 1024, %s3, [#allocation3], 64, 64, 4
    $region17: #{tpu_custom_call.1} parent=1 // pred_fallthru
      _
    // Predicated region
    $region18: #{tpu_custom_call.1} parent=1 // pred_check
      _
    $region19: #{tpu_custom_call.1} parent=1 // pred_check_branch
      %369 = sbr.rel (0) target = $region21
    $region20: #{tpu_custom_call.1} parent=1 // pred_region
      %370 = dma.done [#allocation3], 1024
    $region21: #{tpu_custom_call.1} parent=1 // pred_fallthru
      _
    %371 = vsyncpa [#allocation3], 1

</llo_original>
